<compile_context>
chip_gen: v7x
topology: tpu7x:2x2x1
jax: 0.10.0
libtpu: 0.0.40
codegen_flags: <defaults>
</compile_context>

<pallas_src>
import jax
import jax.numpy as jnp
from jax.experimental import pallas as pl
from jax.experimental.pallas import tpu as pltpu


VMEM_LIMIT_BYTES = 48 * 1024 * 1024    # > scoped defaults everywhere, < v7x 64 MiB
TARGET_BLOCK_BYTES = 8 * 1024 * 1024   # ~8 MiB blocks amortize per-step overhead
MIN_GRID_STEPS = 4                     # >= 2 steps per TensorCore on v7x


def _se_kernel(x_ref, w1_ref, b1_ref, w2_ref, b2_ref, o_ref):
    # x_ref / o_ref: (NB, C, HW)  -- HW on the lane axis (lane-dense when HW%128==0)
    # w1_ref: (C, S)   conv_reduce weight (transposed)
    # b1_ref: (1, S)
    # w2_ref: (S, C)   conv_expand weight (transposed)
    # b2_ref: (1, C)

    # Global average pool over the spatial (lane) axis, f32 accumulation,
    # reducing straight from the VMEM ref (no long-lived upcast copy).
    pooled = jnp.mean(x_ref[...], axis=-1, dtype=jnp.float32)        # (NB, C)

    # conv_reduce (1x1 conv == matmul) + SiLU, batched over the NB images.
    h = jnp.dot(pooled, w1_ref[...], preferred_element_type=jnp.float32)
    h = h + b1_ref[...]
    h = h * (1.0 / (1.0 + jnp.exp(-h)))                              # SiLU

    # conv_expand (1x1 conv == matmul) + Sigmoid -> per-(image,channel) gate.
    s = jnp.dot(h, w2_ref[...], preferred_element_type=jnp.float32)
    s = s + b2_ref[...]
    s = 1.0 / (1.0 + jnp.exp(-s))                                    # (NB, C)

    # Re-read x from VMEM and broadcast the gate along the lane (spatial)
    # axis.  The wide elementwise pass stays in the input dtype (a no-op cast
    # for f32; for bf16 the gate is rounded once — harmless in practice).
    gate = s.astype(x_ref.dtype)[:, :, None]                         # (NB, C, 1)
    o_ref[...] = (x_ref[...] * gate).astype(o_ref.dtype)


def _pick_block_batch(n, per_image_bytes, *, target_bytes, hard_cap_bytes,
                      min_steps=MIN_GRID_STEPS):
    """Largest divisor NB of n such that the block stays within both the perf
    target and the hard VMEM cap, while keeping at least `min_steps` grid
    steps whenever n allows it (feeds both v7x TensorCores and lets the
    double-buffered pipeline overlap)."""
    need_steps = min(min_steps, n)
    byte_cap = min(target_bytes, hard_cap_bytes)
    best = 1
    for nb in range(1, n + 1):
        if n % nb:
            continue
        if nb * per_image_bytes > byte_cap:
            break
        if n // nb >= need_steps:
            best = nb
    return best


def _squeeze_excite_xla(x, w_reduce, b_reduce, w_expand, b_expand):
    """Plain-XLA fallback (identical semantics) for images whose single-block
    footprint would blow the VMEM budget."""
    p = jnp.mean(x, axis=(2, 3), dtype=jnp.float32)                   # (N, C)
    h = p @ w_reduce.T.astype(jnp.float32) + b_reduce.astype(jnp.float32)
    h = h * (1.0 / (1.0 + jnp.exp(-h)))
    s = h @ w_expand.T.astype(jnp.float32) + b_expand.astype(jnp.float32)
    s = 1.0 / (1.0 + jnp.exp(-s))
    return (s.astype(x.dtype)[:, :, None, None] * x).astype(x.dtype)


def squeeze_excite(x_nchw, w_reduce, b_reduce, w_expand, b_expand):
    """x_nchw: (N, C, H, W); w_reduce: (S, C); w_expand: (C, S)."""
    N, C, H, W = x_nchw.shape
    S = w_reduce.shape[0]
    HW = H * W

    # Kernel-friendly parameter layouts (tiny, negligible traffic).
    w1 = jnp.transpose(w_reduce)           # (C, S)
    b1 = b_reduce.reshape(1, S)
    w2 = jnp.transpose(w_expand)           # (S, C)
    b2 = b_expand.reshape(1, C)

    per_image_bytes = C * HW * x_nchw.dtype.itemsize
    weight_bytes = (2 * C * S + S + C) * 4

    # Double-buffered in + out blocks ~= 4x block bytes; keep ~20% headroom
    # for Mosaic-internal scratch on top of the weights.
    hard_cap_bytes = int(VMEM_LIMIT_BYTES * 0.8 - 4 * weight_bytes) // 4

    if per_image_bytes > hard_cap_bytes:
        # A single image does not fit the block budget (never the case for
        # EfficientNetV2 SE stages) — degrade gracefully instead of failing.
        return _squeeze_excite_xla(x_nchw, w_reduce, b_reduce, w_expand, b_expand)

    # NCHW is already contiguous as (N, C, H*W): free reshape, no transpose.
    x = x_nchw.reshape(N, C, HW)

    NB = _pick_block_batch(N, per_image_bytes,
                           target_bytes=TARGET_BLOCK_BYTES,
                           hard_cap_bytes=hard_cap_bytes)
    grid = (N // NB,)

    out = pl.pallas_call(
        _se_kernel,
        out_shape=jax.ShapeDtypeStruct((N, C, HW), x.dtype),
        grid_spec=pl.GridSpec(
            grid=grid,
            in_specs=[
                pl.BlockSpec((NB, C, HW), lambda g: (g, 0, 0)),
                pl.BlockSpec((C, S), lambda g: (0, 0)),
                pl.BlockSpec((1, S), lambda g: (0, 0)),
                pl.BlockSpec((S, C), lambda g: (0, 0)),
                pl.BlockSpec((1, C), lambda g: (0, 0)),
            ],
            out_specs=pl.BlockSpec((NB, C, HW), lambda g: (g, 0, 0)),
        ),
        compiler_params=pltpu.CompilerParams(
            dimension_semantics=("parallel",),
            vmem_limit_bytes=VMEM_LIMIT_BYTES,
        ),
    )(x, w1, b1, w2, b2)

    # Free reshape back to NCHW.
    return out.reshape(N, C, H, W)


def _reference(x, w_reduce, b_reduce, w_expand, b_expand):
    """Pure-JAX reference matching the PyTorch module exactly (NCHW)."""
    scale = jnp.mean(x, axis=(2, 3), keepdims=True)                  # (N,C,1,1)
    p = scale[:, :, 0, 0]                                            # (N,C)
    h = p @ w_reduce.T + b_reduce                                    # (N,S)
    h = h * jax.nn.sigmoid(h)                                        # SiLU
    s = h @ w_expand.T + b_expand                                    # (N,C)
    s = jax.nn.sigmoid(s)
    return s[:, :, None, None] * x


if __name__ == "__main__":
    # Module config: input_c=16, se_ratio=0.25 -> squeeze_c=4; expand_c=32.
    input_c, expand_c = 16, 32
    squeeze_c = int(input_c * 0.25)        # 4
    N, H, W = 4, 16, 16                    # 4 images -> 4 grid steps (2 per v7x core)

    key = jax.random.PRNGKey(0)
    k_x, k_w1, k_b1, k_w2, k_b2 = jax.random.split(key, 5)

    x = jax.random.normal(k_x, (N, expand_c, H, W), dtype=jnp.float32)
    # Conv2d(expand_c, squeeze_c, 1): weight (squeeze_c, expand_c, 1, 1) -> (S, C)
    w_reduce = jax.random.normal(k_w1, (squeeze_c, expand_c), jnp.float32) * 0.1
    b_reduce = jax.random.normal(k_b1, (squeeze_c,), jnp.float32) * 0.1
    # Conv2d(squeeze_c, expand_c, 1): weight (expand_c, squeeze_c, 1, 1) -> (C, S)
    w_expand = jax.random.normal(k_w2, (expand_c, squeeze_c), jnp.float32) * 0.1
    b_expand = jax.random.normal(k_b2, (expand_c,), jnp.float32) * 0.1

    out = squeeze_excite(x, w_reduce, b_reduce, w_expand, b_expand)
    out = jax.block_until_ready(out)

    ref = _reference(x, w_reduce, b_reduce, w_expand, b_expand)
    assert out.shape == ref.shape == (N, expand_c, H, W)
    assert jnp.allclose(out, ref, atol=1e-5, rtol=1e-5)

    print("KERNEL_OK")
</pallas_src>

<mosaic_0001>
module attributes {stable_mosaic.version = 11 : i64} {
  func.func @_se_kernel(%arg0: i32, %arg1: memref<1x32x256xf32, #tpu.memory_space<vmem>>, %arg2: memref<32x4xf32, #tpu.memory_space<vmem>>, %arg3: memref<1x4xf32, #tpu.memory_space<vmem>>, %arg4: memref<4x32xf32, #tpu.memory_space<vmem>>, %arg5: memref<1x32xf32, #tpu.memory_space<vmem>>, %arg6: memref<1x32x256xf32, #tpu.memory_space<vmem>>) attributes {dimension_semantics = [#tpu.dimension_semantics<parallel>], iteration_bounds = array<i64: 4>, scalar_prefetch = 0 : i64, scratch_operands = 0 : i64, tpu.core_type = #tpu.core_type<tc>, window_params = [{transform_indices = @transform_0, window_bounds = array<i64: 1, 32, 256>}, {pipeline_mode = #tpu.pipeline_mode<synchronous>, transform_indices = @transform_1, window_bounds = array<i64: 32, 4>}, {pipeline_mode = #tpu.pipeline_mode<synchronous>, transform_indices = @transform_2, window_bounds = array<i64: 1, 4>}, {pipeline_mode = #tpu.pipeline_mode<synchronous>, transform_indices = @transform_3, window_bounds = array<i64: 4, 32>}, {pipeline_mode = #tpu.pipeline_mode<synchronous>, transform_indices = @transform_4, window_bounds = array<i64: 1, 32>}, {transform_indices = @transform_5, window_bounds = array<i64: 1, 32, 256>}]} {
    %c0 = arith.constant 0 : index
    %c0_0 = arith.constant 0 : index
    %c0_1 = arith.constant 0 : index
    %0 = vector.load %arg1[%c0, %c0_0, %c0_1] : memref<1x32x256xf32, #tpu.memory_space<vmem>>, vector<1x32x256xf32>
    %cst = arith.constant dense<0.000000e+00> : vector<1x32xf32>
    %1 = vector.multi_reduction <add>, %0, %cst [2] : vector<1x32x256xf32> to vector<1x32xf32>
    %cst_2 = arith.constant 2.560000e+02 : f32
    %2 = vector.broadcast %cst_2 : f32 to vector<1x32xf32>
    %3 = arith.divf %1, %2 : vector<1x32xf32>
    %c0_3 = arith.constant 0 : index
    %c0_4 = arith.constant 0 : index
    %4 = vector.load %arg2[%c0_3, %c0_4] : memref<32x4xf32, #tpu.memory_space<vmem>>, vector<32x4xf32>
    %cst_5 = arith.constant dense<0.000000e+00> : vector<1x4xf32>
    %5 = tpu.matmul %3, %4, %cst_5 {dimension_numbers = #tpu.dot_dimension_numbers<[1], [0], [0], [1], [0, 0, 1, 1], [], []>} : vector<1x32xf32>, vector<32x4xf32>, vector<1x4xf32> -> vector<1x4xf32>
    %c0_6 = arith.constant 0 : index
    %c0_7 = arith.constant 0 : index
    %6 = vector.load %arg3[%c0_6, %c0_7] : memref<1x4xf32, #tpu.memory_space<vmem>>, vector<1x4xf32>
    %7 = arith.addf %5, %6 : vector<1x4xf32>
    %cst_8 = arith.constant 0.000000e+00 : f32
    %8 = vector.broadcast %cst_8 : f32 to vector<1x4xf32>
    %9 = arith.subf %8, %7 : vector<1x4xf32>
    %10 = math.exp %9 : vector<1x4xf32>
    %cst_9 = arith.constant 1.000000e+00 : f32
    %11 = vector.broadcast %cst_9 : f32 to vector<1x4xf32>
    %12 = arith.addf %11, %10 : vector<1x4xf32>
    %cst_10 = arith.constant 1.000000e+00 : f32
    %13 = vector.broadcast %cst_10 : f32 to vector<1x4xf32>
    %14 = arith.divf %13, %12 : vector<1x4xf32>
    %15 = arith.mulf %7, %14 : vector<1x4xf32>
    %c0_11 = arith.constant 0 : index
    %c0_12 = arith.constant 0 : index
    %16 = vector.load %arg4[%c0_11, %c0_12] : memref<4x32xf32, #tpu.memory_space<vmem>>, vector<4x32xf32>
    %cst_13 = arith.constant dense<0.000000e+00> : vector<1x32xf32>
    %17 = tpu.matmul %15, %16, %cst_13 {dimension_numbers = #tpu.dot_dimension_numbers<[1], [0], [0], [1], [0, 0, 1, 1], [], []>} : vector<1x4xf32>, vector<4x32xf32>, vector<1x32xf32> -> vector<1x32xf32>
    %c0_14 = arith.constant 0 : index
    %c0_15 = arith.constant 0 : index
    %18 = vector.load %arg5[%c0_14, %c0_15] : memref<1x32xf32, #tpu.memory_space<vmem>>, vector<1x32xf32>
    %19 = arith.addf %17, %18 : vector<1x32xf32>
    %cst_16 = arith.constant 0.000000e+00 : f32
    %20 = vector.broadcast %cst_16 : f32 to vector<1x32xf32>
    %21 = arith.subf %20, %19 : vector<1x32xf32>
    %22 = math.exp %21 : vector<1x32xf32>
    %cst_17 = arith.constant 1.000000e+00 : f32
    %23 = vector.broadcast %cst_17 : f32 to vector<1x32xf32>
    %24 = arith.addf %23, %22 : vector<1x32xf32>
    %cst_18 = arith.constant 1.000000e+00 : f32
    %25 = vector.broadcast %cst_18 : f32 to vector<1x32xf32>
    %26 = arith.divf %25, %24 : vector<1x32xf32>
    %27 = vector.shape_cast %26 : vector<1x32xf32> to vector<1x32x1xf32>
    %c0_19 = arith.constant 0 : index
    %c0_20 = arith.constant 0 : index
    %c0_21 = arith.constant 0 : index
    %28 = vector.load %arg1[%c0_19, %c0_20, %c0_21] : memref<1x32x256xf32, #tpu.memory_space<vmem>>, vector<1x32x256xf32>
    %29 = vector.broadcast %27 : vector<1x32x1xf32> to vector<1x32x256xf32>
    %30 = arith.mulf %28, %29 : vector<1x32x256xf32>
    %c0_22 = arith.constant 0 : index
    %c0_23 = arith.constant 0 : index
    %c0_24 = arith.constant 0 : index
    %31 = vector.load %arg6[%c0_22, %c0_23, %c0_24] : memref<1x32x256xf32, #tpu.memory_space<vmem>>, vector<1x32x256xf32>
    tpu.vector_store %arg6[%c0_22, %c0_23, %c0_24], %30 {strides = array<i32>} : memref<1x32x256xf32, #tpu.memory_space<vmem>>, vector<1x32x256xf32>,
    return
  }
  func.func @transform_0(%arg0: i32) -> (i32, i32, i32) {
    %c0_i32 = arith.constant 0 : i32
    %c0_i32_0 = arith.constant 0 : i32
    %c0_i32_1 = arith.constant 0 : i32
    return %arg0, %c0_i32, %c0_i32_0 : i32, i32, i32
  }
  func.func @transform_1(%arg0: i32) -> (i32, i32) {
    %c0_i32 = arith.constant 0 : i32
    %c0_i32_0 = arith.constant 0 : i32
    %c0_i32_1 = arith.constant 0 : i32
    return %c0_i32, %c0_i32_0 : i32, i32
  }
  func.func @transform_2(%arg0: i32) -> (i32, i32) {
    %c0_i32 = arith.constant 0 : i32
    %c0_i32_0 = arith.constant 0 : i32
    %c0_i32_1 = arith.constant 0 : i32
    return %c0_i32, %c0_i32_0 : i32, i32
  }
  func.func @transform_3(%arg0: i32) -> (i32, i32) {
    %c0_i32 = arith.constant 0 : i32
    %c0_i32_0 = arith.constant 0 : i32
    %c0_i32_1 = arith.constant 0 : i32
    return %c0_i32, %c0_i32_0 : i32, i32
  }
  func.func @transform_4(%arg0: i32) -> (i32, i32) {
    %c0_i32 = arith.constant 0 : i32
    %c0_i32_0 = arith.constant 0 : i32
    %c0_i32_1 = arith.constant 0 : i32
    return %c0_i32, %c0_i32_0 : i32, i32
  }
  func.func @transform_5(%arg0: i32) -> (i32, i32, i32) {
    %c0_i32 = arith.constant 0 : i32
    %c0_i32_0 = arith.constant 0 : i32
    %c0_i32_1 = arith.constant 0 : i32
    return %arg0, %c0_i32, %c0_i32_0 : i32, i32, i32
  }
}

</mosaic_0001>

<llo_original>
// kernel: tpu_custom_call.1
$region0: #{tpu_custom_call.1}
  #allocation0 [shape = 'u32[]', space=smem, size = 0x4, offset = 0x4, fixed_abs, tag = 'smem constant byte address 0x4 - core index']
  #allocation1 [shape = 'u32[144,128]{1,0:T(1,128)}', space=vmem, size = 0x12000, scoped, tag = 'internal scratch']
  %s0 = inlined_call_operand.hbm [shape: f32[4,32,256], index: 0, kind: input, shape index: {}]
  %s1 = inlined_call_operand.vmem [shape: f32[32,4], index: 1, kind: input, shape index: {}]
  %s2 = inlined_call_operand.vmem [shape: f32[1,4], index: 2, kind: input, shape index: {}]
  %s3 = inlined_call_operand.vmem [shape: f32[4,32], index: 3, kind: input, shape index: {}]
  %s4 = inlined_call_operand.vmem [shape: f32[1,32], index: 4, kind: input, shape index: {}]
  %s5 = inlined_call_operand.hbm [shape: f32[4,32,256], index: 5, kind: output, shape index: {}]
  %s6 = sld [smem:[#allocation0]]
  $region57: #{tpu_custom_call.1} parent=0
    _
  %s8 = ssub.s32 1, %s6
  %s9 = scalar_select 0, %s8, %s6
  $region1: #{tpu_custom_call.1} parent=0
    #allocation2 [shape = 'u8[65536]{0}', space=vmem, size = 0x10000, scoped, tag = 'input window, operand 0']
    #allocation3 [shape = 's32[2]{0}', space=sflag, size = 0x8, scoped, tag = 'scoped memory for tpu_custom_call.1']
    #allocation4 [shape = 's32[2]{0}', space=sflag, size = 0x8, scoped, tag = 'scoped memory for tpu_custom_call.1']
    #allocation5 [shape = 'u8[65536]{0}', space=vmem, size = 0x10000, scoped, tag = 'output window, operand 0']
    %10 = vsyncpa [#allocation3], 0
    %s11 = scalar_lea.sflag [#allocation3], 1
    %12 = vsyncpa %s11, 0
    %13 = vsyncpa [#allocation4], 0
    %s14 = scalar_lea.sflag [#allocation4], 1
    %15 = vsyncpa %s14, 0
    loop: start=0, step=1, limit=6
    $region2: #{tpu_custom_call.1} parent=1 // loop_pre_header
      _
    $region3: #{tpu_custom_call.1} parent=1 // loop_header
      %s17 = sphi 0, %s21
      %p18 = scmp.ge.s32.totalorder %s17, 6
      %s27 = sphi 0, %s29
      %s30 = sphi 0, %s27
      %s31 = sphi 0, %s30
      %s47 = sphi 0, %s31
      %s51 = sphi 0, %s51
      %s53 = sphi 0, %s51
      %s54 = sphi 0, %s53
      %s68 = sphi 0, %s54
      %s72 = sphi 0, %s72
      %s74 = sphi 0, %s72
      %s75 = sphi 0, %s74
      %s89 = sphi 0, %s75
      %s93 = sphi 0, %s93
      %s95 = sphi 0, %s93
      %s96 = sphi 0, %s95
      %s110 = sphi 0, %s96
      %s114 = sphi 0, %s114
      %s116 = sphi 0, %s114
      %s117 = sphi 0, %s116
      %s131 = sphi 0, %s117
      %s137 = sphi 0, %s139
      %s140 = sphi 0, %s137
      %s141 = sphi 0, %s140
      %s157 = sphi 0, %s141
    $region4: #{tpu_custom_call.1} parent=1 // loop_header_branch
      %20 = sbr.rel (%p18) target = $region8
    $region5: #{tpu_custom_call.1} parent=1 // loop_body
      %s22 = ssub.s32 %s17, 1
      %s23 = ssub.s32 %s17, 2
      %s24 = sadd.s32 %s17, 1
      %s25 = ssub.s32 %s17, %s24
      %p26 = scmp.eq.s32.totalorder %s25, 0
      %s28 = sadd.s32 %s27, 1
      %s29 = scalar_select %p26, %s27, %s28
      %p32 = pneg %p26
      %p33 = scmp.eq.s32.totalorder %s17, 3
      %p34 = por %p32, %p33
      %p35 = scmp.ne.s32.totalorder %s27, %s30
      %p36 = scmp.eq.s32.totalorder %s17, 0
      %p37 = por %p35, %p36
      %p38 = scmp.ne.s32.totalorder %s27, %s30
      %p39 = scmp.eq.s32.totalorder %s22, 3
      %p40 = por %p38, %p39
      %p41 = scmp.ne.s32.totalorder %s30, %s31
      %p42 = scmp.eq.s32.totalorder %s22, 0
      %p43 = por %p41, %p42
      %p44 = scmp.ne.s32.totalorder %s30, %s31
      %p45 = scmp.eq.s32.totalorder %s23, 3
      %p46 = por %p44, %p45
      %p48 = scmp.ne.s32.totalorder %s31, %s47
      %p49 = scmp.eq.s32.totalorder %s23, 0
      %p50 = por %p48, %p49
      %s52 = sadd.s32 %s51, 1
      %p55 = scmp.eq.s32.totalorder %s17, 3
      %p56 = scmp.ne.s32.totalorder %s51, %s53
      %p57 = scmp.eq.s32.totalorder %s17, 0
      %p58 = por %p56, %p57
      %p59 = scmp.ne.s32.totalorder %s51, %s53
      %p60 = scmp.eq.s32.totalorder %s22, 3
      %p61 = por %p59, %p60
      %p62 = scmp.ne.s32.totalorder %s53, %s54
      %p63 = scmp.eq.s32.totalorder %s22, 0
      %p64 = por %p62, %p63
      %p65 = scmp.ne.s32.totalorder %s53, %s54
      %p66 = scmp.eq.s32.totalorder %s23, 3
      %p67 = por %p65, %p66
      %p69 = scmp.ne.s32.totalorder %s54, %s68
      %p70 = scmp.eq.s32.totalorder %s23, 0
      %p71 = por %p69, %p70
      %s73 = sadd.s32 %s72, 1
      %p76 = scmp.eq.s32.totalorder %s17, 3
      %p77 = scmp.ne.s32.totalorder %s72, %s74
      %p78 = scmp.eq.s32.totalorder %s17, 0
      %p79 = por %p77, %p78
      %p80 = scmp.ne.s32.totalorder %s72, %s74
      %p81 = scmp.eq.s32.totalorder %s22, 3
      %p82 = por %p80, %p81
      %p83 = scmp.ne.s32.totalorder %s74, %s75
      %p84 = scmp.eq.s32.totalorder %s22, 0
      %p85 = por %p83, %p84
      %p86 = scmp.ne.s32.totalorder %s74, %s75
      %p87 = scmp.eq.s32.totalorder %s23, 3
      %p88 = por %p86, %p87
      %p90 = scmp.ne.s32.totalorder %s75, %s89
      %p91 = scmp.eq.s32.totalorder %s23, 0
      %p92 = por %p90, %p91
      %s94 = sadd.s32 %s93, 1
      %p97 = scmp.eq.s32.totalorder %s17, 3
      %p98 = scmp.ne.s32.totalorder %s93, %s95
      %p99 = scmp.eq.s32.totalorder %s17, 0
      %p100 = por %p98, %p99
      %p101 = scmp.ne.s32.totalorder %s93, %s95
      %p102 = scmp.eq.s32.totalorder %s22, 3
      %p103 = por %p101, %p102
      %p104 = scmp.ne.s32.totalorder %s95, %s96
      %p105 = scmp.eq.s32.totalorder %s22, 0
      %p106 = por %p104, %p105
      %p107 = scmp.ne.s32.totalorder %s95, %s96
      %p108 = scmp.eq.s32.totalorder %s23, 3
      %p109 = por %p107, %p108
      %p111 = scmp.ne.s32.totalorder %s96, %s110
      %p112 = scmp.eq.s32.totalorder %s23, 0
      %p113 = por %p111, %p112
      %s115 = sadd.s32 %s114, 1
      %p118 = scmp.eq.s32.totalorder %s17, 3
      %p119 = scmp.ne.s32.totalorder %s114, %s116
      %p120 = scmp.eq.s32.totalorder %s17, 0
      %p121 = por %p119, %p120
      %p122 = scmp.ne.s32.totalorder %s114, %s116
      %p123 = scmp.eq.s32.totalorder %s22, 3
      %p124 = por %p122, %p123
      %p125 = scmp.ne.s32.totalorder %s116, %s117
      %p126 = scmp.eq.s32.totalorder %s22, 0
      %p127 = por %p125, %p126
      %p128 = scmp.ne.s32.totalorder %s116, %s117
      %p129 = scmp.eq.s32.totalorder %s23, 3
      %p130 = por %p128, %p129
      %p132 = scmp.ne.s32.totalorder %s117, %s131
      %p133 = scmp.eq.s32.totalorder %s23, 0
      %p134 = por %p132, %p133
      %s135 = ssub.s32 %s17, %s24
      %p136 = scmp.eq.s32.totalorder %s135, 0
      %s138 = sadd.s32 %s137, 1
      %s139 = scalar_select %p136, %s137, %s138
      %p142 = pneg %p136
      %p143 = scmp.eq.s32.totalorder %s17, 3
      %p144 = por %p142, %p143
      %p145 = scmp.ne.s32.totalorder %s137, %s140
      %p146 = scmp.eq.s32.totalorder %s17, 0
      %p147 = por %p145, %p146
      %p148 = scmp.ne.s32.totalorder %s137, %s140
      %p149 = scmp.eq.s32.totalorder %s22, 3
      %p150 = por %p148, %p149
      %p151 = scmp.ne.s32.totalorder %s140, %s141
      %p152 = scmp.eq.s32.totalorder %s22, 0
      %p153 = por %p151, %p152
      %p154 = scmp.ne.s32.totalorder %s140, %s141
      %p155 = scmp.eq.s32.totalorder %s23, 3
      %p156 = por %p154, %p155
      %p158 = scmp.ne.s32.totalorder %s141, %s157
      %p159 = scmp.eq.s32.totalorder %s23, 0
      %p160 = por %p158, %p159
      %p161 = scmp.le.s32.totalorder 1, %s17
      %p162 = scmp.lt.s32.totalorder %s17, 5
      %p163 = pnand %p161, %p162
      %p164 = pneg %p163
      // Predicated region
      $region9: #{tpu_custom_call.1} parent=5 // pred_check
        _
      $region10: #{tpu_custom_call.1} parent=5 // pred_check_branch
        %166 = sbr.rel (%p163) target = $region12
      $region11: #{tpu_custom_call.1} parent=5 // pred_region
        %s167 = ssub.s32 %s17, 1
        // Predicated region
        $region13: #{tpu_custom_call.1} parent=11 // pred_check
          %p168 = pneg %p64
        $region14: #{tpu_custom_call.1} parent=11 // pred_check_branch
          %170 = sbr.rel (%p168) target = $region16
        $region15: #{tpu_custom_call.1} parent=11 // pred_region
          _
        $region16: #{tpu_custom_call.1} parent=11 // pred_fallthru
          _
        // Predicated region
        $region17: #{tpu_custom_call.1} parent=11 // pred_check
          %p171 = pneg %p85
        $region18: #{tpu_custom_call.1} parent=11 // pred_check_branch
          %173 = sbr.rel (%p171) target = $region20
        $region19: #{tpu_custom_call.1} parent=11 // pred_region
          _
        $region20: #{tpu_custom_call.1} parent=11 // pred_fallthru
          _
        // Predicated region
        $region21: #{tpu_custom_call.1} parent=11 // pred_check
          %p174 = pneg %p106
        $region22: #{tpu_custom_call.1} parent=11 // pred_check_branch
          %176 = sbr.rel (%p174) target = $region24
        $region23: #{tpu_custom_call.1} parent=11 // pred_region
          _
        $region24: #{tpu_custom_call.1} parent=11 // pred_fallthru
          _
        // Predicated region
        $region25: #{tpu_custom_call.1} parent=11 // pred_check
          %p177 = pneg %p127
        $region26: #{tpu_custom_call.1} parent=11 // pred_check_branch
          %179 = sbr.rel (%p177) target = $region28
        $region27: #{tpu_custom_call.1} parent=11 // pred_region
          _
        $region28: #{tpu_custom_call.1} parent=11 // pred_fallthru
          _
      $region12: #{tpu_custom_call.1} parent=5 // pred_fallthru
        _
      %p180 = scmp.lt.s32.totalorder %s17, 4
      // Predicated region
      $region29: #{tpu_custom_call.1} parent=5 // pred_check
        %p181 = pneg %p180
      $region30: #{tpu_custom_call.1} parent=5 // pred_check_branch
        %183 = sbr.rel (%p181) target = $region32
      $region31: #{tpu_custom_call.1} parent=5 // pred_region
        // Predicated region
        $region33: #{tpu_custom_call.1} parent=31 // pred_check
          %p184 = pneg %p37
        $region34: #{tpu_custom_call.1} parent=31 // pred_check_branch
          %186 = sbr.rel (%p184) target = $region36
        $region35: #{tpu_custom_call.1} parent=31 // pred_region
          %s187 = sand.u32 %s27, 1
          %s188 = scalar_lea.sflag [#allocation3], %s187
          %s189 = sand.u32 %s27, 1
          %s190 = smul.addr %s189, 64
          %s191 = scalar_lea.vmem [#allocation2], %s190
          %s193 = ssub.s32 1024, 1024
          %194 = vsyncadd %s188, %s193
          %s195 = smul.addr %s17, 8
          %s196 = smul.addr %s195, 128
          %s197 = scalar_lea.hbm %s0, %s196
          %s198 = sshll.u32 %s191, 4
          %s199 = int_to_ptr.vmem [resolvable:$true] %s198
          %204 = dma.hbm_to_vmem [thread:$0]  %s197, 1024, %s199, %s188, 256, 256, 16
        $region36: #{tpu_custom_call.1} parent=31 // pred_fallthru
          _
      $region32: #{tpu_custom_call.1} parent=5 // pred_fallthru
        _
      %p205 = scmp.le.s32.totalorder 1, %s17
      %p206 = scmp.lt.s32.totalorder %s17, 5
      %p207 = pnand %p205, %p206
      %p208 = pneg %p207
      // Predicated region
      $region37: #{tpu_custom_call.1} parent=5 // pred_check
        _
      $region38: #{tpu_custom_call.1} parent=5 // pred_check_branch
        %210 = sbr.rel (%p207) target = $region40
      $region39: #{tpu_custom_call.1} parent=5 // pred_region
        %s211 = ssub.s32 %s17, 1
        %s212 = sand.u32 %s30, 1
        %s213 = scalar_lea.sflag [#allocation3], %s212
        %s214 = sand.u32 %s30, 1
        %s215 = smul.addr %s214, 64
        %s216 = scalar_lea.vmem [#allocation2], %s215
        // Predicated region
        $region41: #{tpu_custom_call.1} parent=39 // pred_check
          %p217 = pneg %p43
        $region42: #{tpu_custom_call.1} parent=39 // pred_check_branch
          %219 = sbr.rel (%p217) target = $region44
        $region43: #{tpu_custom_call.1} parent=39 // pred_region
          %220 = dma.done %s213, 1024
        $region44: #{tpu_custom_call.1} parent=39 // pred_fallthru
          _
        %s221 = sand.u32 %s30, 1
        %s222 = scalar_lea.sflag [#allocation3], %s221
        %s223 = sand.u32 %s30, 1
        %s224 = smul.addr %s223, 64
        %s225 = scalar_lea.vmem [#allocation2], %s224
        %p226 = pneg %p43
        %p227 = pneg %p40
        %p228 = pneg %p64
        %p229 = pneg %p61
        %p230 = pneg %p85
        %p231 = pneg %p82
        %p232 = pneg %p106
        %p233 = pneg %p103
        %p234 = pneg %p127
        %p235 = pneg %p124
        %p236 = pneg %p153
        %p237 = pneg %p150
        %s238 = sand.u32 %s140, 1
        %s239 = scalar_lea.sflag [#allocation4], %s238
        %s240 = sand.u32 %s140, 1
        %s241 = smul.addr %s240, 64
        %s242 = scalar_lea.vmem [#allocation5], %s241
        %v243 = vld [vmem:[%s216] sm:$0xff]
        %v244 = vld [vmem:[%s216 + $0x8] sm:$0xff]
        %v245 = vld [vmem:[%s216 + $0x10] sm:$0xff]
        %v246 = vld [vmem:[%s216 + $0x18] sm:$0xff]
        %v247 = vld [vmem:[%s216 + $0x20] sm:$0xff]
        %v248 = vld [vmem:[%s216 + $0x28] sm:$0xff]
        %v249 = vld [vmem:[%s216 + $0x30] sm:$0xff]
        %v250 = vld [vmem:[%s216 + $0x38] sm:$0xff]
        %v251 = vadd.f32 %v243, %v244
        %252 = vadd.xlane.f32.xlu0 %v251
        %v253 = vpop.xlane.xlu0 %252
        %v254 = vadd.f32 %v245, %v246
        %255 = vadd.xlane.f32.xlu0 %v254
        %v256 = vpop.xlane.xlu0 %255
        %v257 = vadd.f32 %v247, %v248
        %258 = vadd.xlane.f32.xlu0 %v257
        %v259 = vpop.xlane.xlu0 %258
        %v260 = vadd.f32 %v249, %v250
        %261 = vadd.xlane.f32.xlu0 %v260
        %v262 = vpop.xlane.xlu0 %261
        %v263 = vrcp.pop 256.0
        %v264 = vmul.f32 %v253, %v263
        %v265 = vmul.f32 %v256, %v263
        %v266 = vmul.f32 %v259, %v263
        %v267 = vmul.f32 %v262, %v263
        %v268 = vld [vmem:[%s1] sm:$0xff]
        %v269 = vld [vmem:[%s1 + $0x8] sm:$0xff]
        %v270 = vld [vmem:[%s1 + $0x10] sm:$0xff]
        %v271 = vld [vmem:[%s1 + $0x18] sm:$0xff]
        %v272 = vld [vmem:[%s2] sm:$0x1]
        %v277 = vlaneseq
        %v278 = vand.u32 %v277, 127
        %v279 = vlaneseq
        %v280 = vshrl.u32 %v279, 7
        %v281 = vsub.s32 %v278, %v280
        %v282 = vrot.slane %v264, %v281
        %v283 = vadd.s32 %v278, 4294967288
        %v284 = vlaneseq
        %v285 = vshrl.u32 %v284, 7
        %v286 = vsub.s32 %v283, %v285
        %v287 = vrot.slane %v265, %v286
        %vm288 = vcmask 130112
        %v289 = vsel %vm288, %v287, %v282
        %v290 = vadd.s32 %v278, 4294967280
        %v291 = vlaneseq
        %v292 = vshrl.u32 %v291, 7
        %v293 = vsub.s32 %v290, %v292
        %v294 = vrot.slane %v266, %v293
        %vm295 = vcmask 195712
        %v296 = vsel %vm295, %v294, %v289
        %v297 = vadd.s32 %v278, 4294967272
        %v298 = vlaneseq
        %v299 = vshrl.u32 %v298, 7
        %v300 = vsub.s32 %v297, %v299
        %v301 = vrot.slane %v267, %v300
        %vm302 = vcmask 261312
        %v303 = vsel %vm302, %v301, %v296
        %vm304 = vcmask 261120
        %v305 = vsel %vm304, %v303, 0
        %307 = vmatprep.subr.mxu0 0.0
        %308 = vmatpush1.msra.mxu0 %v268
        %309 = vmatprep.subr.mxu0 0.0
        %310 = vmatpush1.msra.mxu0 %v269
        %311 = vmatprep.subr.mxu0 0.0
        %312 = vmatpush1.msra.mxu0 %v270
        %313 = vmatprep.subr.mxu0 0.0
        %314 = vmatpush1.msra.mxu0 %v271
        %315 = vmatprep.subr.mxu0 0.0
        %316 = vmatpush1.msra.mxu0 0.0
        %317 = vmatprep.subr.mxu0 0.0
        %318 = vmatpush1.msra.mxu0 0.0
        %319 = vmatprep.subr.mxu0 0.0
        %320 = vmatpush1.msra.mxu0 0.0
        %321 = vmatprep.subr.mxu0 0.0
        %322 = vmatpush1.msra.mxu0 0.0
        %323 = vmatprep.subr.mxu0 0.0
        %324 = vmatpush1.msra.mxu0 0.0
        %325 = vmatprep.subr.mxu0 0.0
        %326 = vmatpush1.msra.mxu0 0.0
        %327 = vmatprep.subr.mxu0 0.0
        %328 = vmatpush1.msra.mxu0 0.0
        %329 = vmatprep.subr.mxu0 0.0
        %330 = vmatpush1.msra.mxu0 0.0
        %331 = vmatprep.subr.mxu0 0.0
        %332 = vmatpush1.msra.mxu0 0.0
        %333 = vmatprep.subr.mxu0 0.0
        %334 = vmatpush1.msra.mxu0 0.0
        %335 = vmatprep.subr.mxu0 0.0
        %336 = vmatpush1.msra.mxu0 0.0
        %337 = vmatprep.subr.mxu0 0.0
        %338 = vmatpush1.msra.mxu0 0.0
        %339 = vmatprep.subr.mxu0 0.0
        %340 = vmatpush1.msra.mxu0 0.0
        %341 = vmatprep.subr.mxu0 0.0
        %342 = vmatpush1.msra.mxu0 0.0
        %343 = vmatprep.subr.mxu0 0.0
        %344 = vmatpush1.msra.mxu0 0.0
        %345 = vmatprep.subr.mxu0 0.0
        %346 = vmatpush1.msra.mxu0 0.0
        %347 = vmatprep.subr.mxu0 0.0
        %348 = vmatpush1.msra.mxu0 0.0
        %349 = vmatprep.subr.mxu0 0.0
        %350 = vmatpush1.msra.mxu0 0.0
        %351 = vmatprep.subr.mxu0 0.0
        %352 = vmatpush1.msra.mxu0 0.0
        %353 = vmatprep.subr.mxu0 0.0
        %354 = vmatpush1.msra.mxu0 0.0
        %355 = vmatprep.subr.mxu0 0.0
        %356 = vmatpush1.msra.mxu0 0.0
        %357 = vmatprep.subr.mxu0 0.0
        %358 = vmatpush1.msra.mxu0 0.0
        %359 = vmatprep.subr.mxu0 0.0
        %360 = vmatpush1.msra.mxu0 0.0
        %361 = vmatprep.subr.mxu0 0.0
        %362 = vmatpush1.msra.mxu0 0.0
        %363 = vmatprep.subr.mxu0 0.0
        %364 = vmatpush1.msra.mxu0 0.0
        %365 = vmatprep.subr.mxu0 0.0
        %366 = vmatpush1.msra.mxu0 0.0
        %367 = vmatprep.subr.mxu0 0.0
        %368 = vmatpush1.msra.mxu0 0.0
        %369 = vmatprep.subr.mxu0 0.0
        %370 = vmatpush1.msra.mxu0 0.0
        %371 = vmatprep.mubr.f32.mxu0 0.0
        %372 = vmatmul.mubr.f32.gmra.mrb[0].mxu0 %v305
        %v373 = vpop.f32.mrb[0].mxu0
        %v374 = vadd.f32 %v272, %v373
        %v375 = vpop.f32.mrb[0].mxu0
        %376 = vdwg.mxu0
        %v377 = vsub.f32 0.0, %v374
        %v378 = vmul.f32 %v377, 1.442695
        %v379 = vpow.pop %v378
        %v380 = vadd.f32 %v379, 1.0
        %v381 = vrcp.pop %v380
        %v382 = vmul.f32 1.0, %v381
        %v383 = vmul.f32 %v374, %v382
        %v384 = vld [vmem:[%s3] sm:$0xf]
        %v385 = vld [vmem:[%s4] sm:$0x1]
        %vm386 = vcmask 31744
        %v388 = vsel %vm386, %v383, 0
        %vm390 = vcmask 1043456
        %v392 = vsel %vm390, %v384, 0
        %394 = vmatprep.subr.mxu0 0.0
        %395 = vmatpush1.msra.mxu0 %v392
        %396 = vmatprep.subr.mxu0 0.0
        %397 = vmatpush1.msra.mxu0 0.0
        %398 = vmatprep.subr.mxu0 0.0
        %399 = vmatpush1.msra.mxu0 0.0
        %400 = vmatprep.subr.mxu0 0.0
        %401 = vmatpush1.msra.mxu0 0.0
        %402 = vmatprep.subr.mxu0 0.0
        %403 = vmatpush1.msra.mxu0 0.0
        %404 = vmatprep.subr.mxu0 0.0
        %405 = vmatpush1.msra.mxu0 0.0
        %406 = vmatprep.subr.mxu0 0.0
        %407 = vmatpush1.msra.mxu0 0.0
        %408 = vmatprep.subr.mxu0 0.0
        %409 = vmatpush1.msra.mxu0 0.0
        %410 = vmatprep.subr.mxu0 0.0
        %411 = vmatpush1.msra.mxu0 0.0
        %412 = vmatprep.subr.mxu0 0.0
        %413 = vmatpush1.msra.mxu0 0.0
        %414 = vmatprep.subr.mxu0 0.0
        %415 = vmatpush1.msra.mxu0 0.0
        %416 = vmatprep.subr.mxu0 0.0
        %417 = vmatpush1.msra.mxu0 0.0
        %418 = vmatprep.subr.mxu0 0.0
        %419 = vmatpush1.msra.mxu0 0.0
        %420 = vmatprep.subr.mxu0 0.0
        %421 = vmatpush1.msra.mxu0 0.0
        %422 = vmatprep.subr.mxu0 0.0
        %423 = vmatpush1.msra.mxu0 0.0
        %424 = vmatprep.subr.mxu0 0.0
        %425 = vmatpush1.msra.mxu0 0.0
        %426 = vmatprep.subr.mxu0 0.0
        %427 = vmatpush1.msra.mxu0 0.0
        %428 = vmatprep.subr.mxu0 0.0
        %429 = vmatpush1.msra.mxu0 0.0
        %430 = vmatprep.subr.mxu0 0.0
        %431 = vmatpush1.msra.mxu0 0.0
        %432 = vmatprep.subr.mxu0 0.0
        %433 = vmatpush1.msra.mxu0 0.0
        %434 = vmatprep.subr.mxu0 0.0
        %435 = vmatpush1.msra.mxu0 0.0
        %436 = vmatprep.subr.mxu0 0.0
        %437 = vmatpush1.msra.mxu0 0.0
        %438 = vmatprep.subr.mxu0 0.0
        %439 = vmatpush1.msra.mxu0 0.0
        %440 = vmatprep.subr.mxu0 0.0
        %441 = vmatpush1.msra.mxu0 0.0
        %442 = vmatprep.subr.mxu0 0.0
        %443 = vmatpush1.msra.mxu0 0.0
        %444 = vmatprep.subr.mxu0 0.0
        %445 = vmatpush1.msra.mxu0 0.0
        %446 = vmatprep.subr.mxu0 0.0
        %447 = vmatpush1.msra.mxu0 0.0
        %448 = vmatprep.subr.mxu0 0.0
        %449 = vmatpush1.msra.mxu0 0.0
        %450 = vmatprep.subr.mxu0 0.0
        %451 = vmatpush1.msra.mxu0 0.0
        %452 = vmatprep.subr.mxu0 0.0
        %453 = vmatpush1.msra.mxu0 0.0
        %454 = vmatprep.subr.mxu0 0.0
        %455 = vmatpush1.msra.mxu0 0.0
        %456 = vmatprep.subr.mxu0 0.0
        %457 = vmatpush1.msra.mxu0 0.0
        %458 = vmatprep.mubr.f32.mxu0 0.0
        %459 = vmatmul.mubr.f32.gmra.mrb[0].mxu0 %v388
        %v460 = vpop.f32.mrb[0].mxu0
        %v461 = vadd.f32 %v385, %v460
        %v462 = vpop.f32.mrb[0].mxu0
        %463 = vdwg.mxu0
        %v464 = vsub.f32 0.0, %v461
        %v465 = vmul.f32 %v464, 1.442695
        %v466 = vpow.pop %v465
        %v467 = vadd.f32 %v466, 1.0
        %v468 = vrcp.pop %v467
        %v469 = vmul.f32 1.0, %v468
        %v470 = vlaneseq
        %v471 = vshrl.u32 %v470, 7
        %v472 = vsub.s32 0, %v471
        %v473 = vrot.slane %v469, %v472
        %475 = vbcast.lane.b32.xlu0 %v473, 256
        %v476 = vpop.permute.xlu0 %475
        %s478 = sor.u32 256, 8
        %479 = vbcast.lane.b32.xlu0 %v473, %s478
        %v480 = vpop.permute.xlu0 %479
        %s482 = sor.u32 256, 16
        %483 = vbcast.lane.b32.xlu0 %v473, %s482
        %v484 = vpop.permute.xlu0 %483
        %s486 = sor.u32 256, 24
        %487 = vbcast.lane.b32.xlu0 %v473, %s486
        %v488 = vpop.permute.xlu0 %487
        %v489 = vmul.f32 %v243, %v476
        %v490 = vmul.f32 %v244, %v476
        %v491 = vmul.f32 %v245, %v480
        %v492 = vmul.f32 %v246, %v480
        %v493 = vmul.f32 %v247, %v484
        %v494 = vmul.f32 %v248, %v484
        %v495 = vmul.f32 %v249, %v488
        %v496 = vmul.f32 %v250, %v488
        %497 = vst [vmem:[%s242] sm:$0xff] %v489
        %498 = vst [vmem:[%s242 + $0x8] sm:$0xff] %v490
        %499 = vst [vmem:[%s242 + $0x10] sm:$0xff] %v491
        %500 = vst [vmem:[%s242 + $0x18] sm:$0xff] %v492
        %501 = vst [vmem:[%s242 + $0x20] sm:$0xff] %v493
        %502 = vst [vmem:[%s242 + $0x28] sm:$0xff] %v494
        %503 = vst [vmem:[%s242 + $0x30] sm:$0xff] %v495
        %504 = vst [vmem:[%s242 + $0x38] sm:$0xff] %v496
        %s505 = sand.u32 %s140, 1
        %s506 = scalar_lea.sflag [#allocation4], %s505
        %s507 = sand.u32 %s140, 1
        %s508 = smul.addr %s507, 64
        %s509 = scalar_lea.vmem [#allocation5], %s508
        // Predicated region
        $region45: #{tpu_custom_call.1} parent=39 // pred_check
          %p510 = pneg %p150
        $region46: #{tpu_custom_call.1} parent=39 // pred_check_branch
          %512 = sbr.rel (%p510) target = $region48
        $region47: #{tpu_custom_call.1} parent=39 // pred_region
          %s514 = ssub.s32 1024, 1024
          %515 = vsyncadd %s506, %s514
          %s516 = smul.addr %s22, 8
          %s517 = smul.addr %s516, 128
          %s518 = scalar_lea.hbm %s5, %s517
          %s519 = sshll.u32 %s509, 4
          %s520 = int_to_ptr.vmem [resolvable:$true] %s519
          %525 = dma.vmem_to_hbm [thread:$0]  %s520, 1024, %s518, %s506, 256, 256, 16
        $region48: #{tpu_custom_call.1} parent=39 // pred_fallthru
          _
      $region40: #{tpu_custom_call.1} parent=5 // pred_fallthru
        _
      %p526 = scmp.le.s32.totalorder 2, %s17
      // Predicated region
      $region49: #{tpu_custom_call.1} parent=5 // pred_check
        %p527 = pneg %p526
      $region50: #{tpu_custom_call.1} parent=5 // pred_check_branch
        %529 = sbr.rel (%p527) target = $region52
      $region51: #{tpu_custom_call.1} parent=5 // pred_region
        %s530 = ssub.s32 %s17, 2
        // Predicated region
        $region53: #{tpu_custom_call.1} parent=51 // pred_check
          %p531 = pneg %p156
        $region54: #{tpu_custom_call.1} parent=51 // pred_check_branch
          %533 = sbr.rel (%p531) target = $region56
        $region55: #{tpu_custom_call.1} parent=51 // pred_region
          %s534 = sand.u32 %s141, 1
          %s535 = scalar_lea.sflag [#allocation4], %s534
          %s536 = sand.u32 %s141, 1
          %s537 = smul.addr %s536, 64
          %s538 = scalar_lea.vmem [#allocation5], %s537
          %539 = dma.done %s535, 1024
        $region56: #{tpu_custom_call.1} parent=51 // pred_fallthru
          _
      $region52: #{tpu_custom_call.1} parent=5 // pred_fallthru
        _
    $region6: #{tpu_custom_call.1} parent=1 // loop_footer
      %s21 = sadd.s32 1, %s17
    $region7: #{tpu_custom_call.1} parent=1 // loop_footer_branch
      %16 = sbr.rel target = $region3
    $region8: #{tpu_custom_call.1} parent=1 // loop_exit
      _
    %540 = vsyncpa [#allocation3], 1
    %s541 = scalar_lea.sflag [#allocation3], 1
    %542 = vsyncpa %s541, 1
    %543 = vsyncpa [#allocation4], 1
    %s544 = scalar_lea.sflag [#allocation4], 1
    %545 = vsyncpa %s544, 1

</llo_original>
